<compile_context>
chip_gen: v6e
topology: v6e:2x2x1
jax: 0.10.0
libtpu: 0.0.40
codegen_flags: <defaults>
</compile_context>

<pallas_src>
import functools

import jax
import jax.numpy as jnp
from jax import lax
from jax.experimental import pallas as pl
from jax.experimental.pallas import tpu as pltpu

LANE_W = 1024        # lane-dense last dim (multiple of 128; 8 vregs wide per row)
PSUM_ROWS = 8        # sublane rows of the per-step partial sum (one f32 vreg tall)
PSUM_LANES = 128     # lanes of the per-step partial sum (one vreg wide)
CHUNK_ROWS = 64      # rows per in-kernel chunk -> f32 temporaries stay <= ~256 KiB


def _round_down(x, m):
    return (x // m) * m


def _sublane_multiple(dtype):
    itemsize = jnp.dtype(dtype).itemsize
    return max(8, 32 // max(itemsize, 1))


def _tpu_tiling():
    """Generation-aware (max_block_rows, vmem_limit_bytes)."""
    vmem_phys = 128 << 20
    try:
        info = pltpu.get_tpu_info()
        vmem_phys = getattr(info, "vmem_capacity_bytes", vmem_phys) or vmem_phys
    except Exception:
        pass  # fall back to the conservative 512-row config below
    if vmem_phys <= (64 << 20):
        # v7x-class: faster HBM makes the ~0.35us/step fixed cost dominate, so go
        # to 1024-row tiles (2 inputs x 2 bufs x 4 MiB = 16 MiB, limit 40 MiB).
        return 1024, 40 << 20
    # v5e / v6e (128 MiB physical VMEM): 512-row tiles are on the flat part of
    # the measured tile-size curve; double-buffered inputs are only 8 MiB.
    return 512, 32 << 20


def _choose_block_rows(rows, sub, max_rows):
    """Row-block size: big enough to amortize per-step overhead, small enough that
    mid-sized inputs still get >= 2 grid steps for megacore sharding."""
    quantum = CHUNK_ROWS if rows >= 2 * CHUNK_ROWS else sub
    half = _round_down(rows // 2, quantum)
    return max(sub, min(max_rows, half))


def _kl_sum_kernel(pred_ref, label_ref, psum_ref, *, block_rows, chunk_rows,
                   total_rows, needs_row_mask):
    """Per-grid-step partial sum of exp(label) * (label - pred).

    Streams the (block_rows, LANE_W) tile in chunk_rows-row chunks (bounded f32
    temporaries) into an (PSUM_ROWS, LANE_W) f32 accumulator, then folds lanes to
    PSUM_LANES before the tiny writeback. All reductions are vreg-wise VPU adds.
    """
    acc = jnp.zeros((PSUM_ROWS, LANE_W), jnp.float32)
    if needs_row_mask:
        row_base = pl.program_id(0) * block_rows

    for c in range(block_rows // chunk_rows):
        sl = pl.ds(c * chunk_rows, chunk_rows)
        lbl = label_ref[sl, :].astype(jnp.float32)
        prd = pred_ref[sl, :].astype(jnp.float32)
        loss = jnp.exp(lbl) * (lbl - prd)
        if needs_row_mask:
            # Last grid block may extend past the real array; zero those rows.
            rid = row_base + c * chunk_rows + lax.broadcasted_iota(
                jnp.int32, (chunk_rows, 1), 0)
            loss = jnp.where(rid < total_rows, loss, 0.0)
        # Fold chunk_rows -> PSUM_ROWS sublane rows (pure VPU adds, no XLU).
        acc = acc + jnp.sum(loss.reshape(-1, PSUM_ROWS, LANE_W), axis=0)

    # Fold LANE_W -> PSUM_LANES with lane-aligned slice adds (still VPU), so the
    # per-step HBM writeback shrinks 8x.
    folded = acc[:, 0:PSUM_LANES]
    for g in range(1, LANE_W // PSUM_LANES):
        folded = folded + acc[:, g * PSUM_LANES:(g + 1) * PSUM_LANES]
    psum_ref[...] = folded


def _kl_elem_kernel(pred_ref, label_ref, out_ref, *, block_rows, chunk_rows,
                    loss_scale):
    """Elementwise loss_scale * exp(label) * (label - pred) (reduction='none')."""
    for c in range(block_rows // chunk_rows):
        sl = pl.ds(c * chunk_rows, chunk_rows)
        lbl = label_ref[sl, :].astype(jnp.float32)
        prd = pred_ref[sl, :].astype(jnp.float32)
        loss = jnp.exp(lbl) * (lbl - prd)
        if loss_scale != 1.0:
            loss = loss * loss_scale            # static python float, folded here
        out_ref[sl, :] = loss.astype(out_ref.dtype)


def _lane_aligned_views(pred_f, label_f, rows, rem):
    """(rows, LANE_W) views of the row-aligned prefix (free reshape when rem==0)."""
    n_main = rows * LANE_W
    if rem == 0:
        return pred_f.reshape(rows, LANE_W), label_f.reshape(rows, LANE_W)
    # Lane-unaligned sizes only: bounded prefix slice (no full jnp.pad of inputs).
    return (lax.slice(pred_f, (0,), (n_main,)).reshape(rows, LANE_W),
            lax.slice(label_f, (0,), (n_main,)).reshape(rows, LANE_W))


def _kl_total_sum(pred, label):
    """f32 sum over all elements of exp(label) * (label - pred)."""
    n = pred.size
    pred_f = pred.reshape(-1)
    label_f = label.reshape(-1)
    rows = n // LANE_W
    rem = n - rows * LANE_W

    total = jnp.zeros((), jnp.float32)

    if rows > 0:
        max_rows, vmem_limit = _tpu_tiling()
        sub = max(_sublane_multiple(pred.dtype), _sublane_multiple(label.dtype))
        block_rows = _choose_block_rows(rows, sub, max_rows)
        chunk_rows = min(CHUNK_ROWS, block_rows)
        grid = pl.cdiv(rows, block_rows)
        needs_row_mask = (rows % block_rows) != 0

        pred_2d, label_2d = _lane_aligned_views(pred_f, label_f, rows, rem)

        kernel = functools.partial(
            _kl_sum_kernel, block_rows=block_rows, chunk_rows=chunk_rows,
            total_rows=rows, needs_row_mask=needs_row_mask)

        psum = pl.pallas_call(
            kernel,
            out_shape=jax.ShapeDtypeStruct((grid * PSUM_ROWS, PSUM_LANES),
                                           jnp.float32),
            grid_spec=pltpu.PrefetchScalarGridSpec(
                num_scalar_prefetch=0,
                grid=(grid,),
                in_specs=[
                    pl.BlockSpec((block_rows, LANE_W), lambda i: (i, 0)),
                    pl.BlockSpec((block_rows, LANE_W), lambda i: (i, 0)),
                ],
                out_specs=pl.BlockSpec((PSUM_ROWS, PSUM_LANES), lambda i: (i, 0)),
            ),
            compiler_params=pltpu.CompilerParams(
                dimension_semantics=("parallel",),
                vmem_limit_bytes=vmem_limit,
            ),
        )(pred_2d, label_2d)

        # Tiny finish-up reduction in JAX (keeps the grid axis fully parallel).
        total = total + jnp.sum(psum)

    if rem > 0:
        # Ragged sub-row tail (< LANE_W elements): tiny jnp expression.
        pt = lax.slice(pred_f, (n - rem,), (n,)).astype(jnp.float32)
        lt = lax.slice(label_f, (n - rem,), (n,)).astype(jnp.float32)
        total = total + jnp.sum(jnp.exp(lt) * (lt - pt))

    return total


def _kl_elementwise(pred, label, loss_weight):
    """Elementwise KL term (scaled by loss_weight), in pred's original shape."""
    orig_shape = pred.shape
    n = pred.size
    out_dtype = jnp.promote_types(pred.dtype, label.dtype)
    pred_f = pred.reshape(-1)
    label_f = label.reshape(-1)
    rows = n // LANE_W
    rem = n - rows * LANE_W

    pieces = []
    if rows > 0:
        max_rows, vmem_limit = _tpu_tiling()
        sub = max(_sublane_multiple(pred.dtype), _sublane_multiple(label.dtype))
        block_rows = _choose_block_rows(rows, sub, max_rows)
        chunk_rows = min(CHUNK_ROWS, block_rows)
        grid = pl.cdiv(rows, block_rows)

        pred_2d, label_2d = _lane_aligned_views(pred_f, label_f, rows, rem)

        kernel = functools.partial(
            _kl_elem_kernel, block_rows=block_rows, chunk_rows=chunk_rows,
            loss_scale=loss_weight)

        main = pl.pallas_call(
            kernel,
            out_shape=jax.ShapeDtypeStruct((rows, LANE_W), out_dtype),
            grid_spec=pltpu.PrefetchScalarGridSpec(
                num_scalar_prefetch=0,
                grid=(grid,),
                in_specs=[
                    pl.BlockSpec((block_rows, LANE_W), lambda i: (i, 0)),
                    pl.BlockSpec((block_rows, LANE_W), lambda i: (i, 0)),
                ],
                out_specs=pl.BlockSpec((block_rows, LANE_W), lambda i: (i, 0)),
            ),
            compiler_params=pltpu.CompilerParams(
                dimension_semantics=("parallel",),
                vmem_limit_bytes=vmem_limit,
            ),
        )(pred_2d, label_2d)
        pieces.append(main.reshape(-1))

    if rem > 0:
        pt = lax.slice(pred_f, (n - rem,), (n,)).astype(jnp.float32)
        lt = lax.slice(label_f, (n - rem,), (n,)).astype(jnp.float32)
        tail = jnp.exp(lt) * (lt - pt)
        if loss_weight != 1.0:
            tail = tail * loss_weight
        pieces.append(tail.astype(out_dtype))

    out = pieces[0] if len(pieces) == 1 else jnp.concatenate(pieces)
    return out.reshape(orig_shape)


@functools.partial(jax.jit, static_argnames=("reduction", "loss_weight"))
def kl_divergence_loss(pred, label, reduction="mean", loss_weight=1.0):
    """Pallas implementation of KLDivergence.forward (weight=None, avg_factor=None)."""
    # TODO(synk): class_weight / weight / avg_factor are accepted but unused by
    # kl_divergence in the reference module's default path, so they are omitted.
    loss_weight = float(loss_weight)

    if reduction == "none":
        return _kl_elementwise(pred, label, loss_weight)

    if reduction not in ("mean", "sum"):
        raise ValueError(f"unsupported reduction: {reduction}")

    total = _kl_total_sum(pred, label)
    if reduction == "mean":
        # F.kl_div('mean') averages over ALL elements; weight_reduce_loss of the
        # resulting scalar is then a no-op.
        total = total / pred.size
    if loss_weight != 1.0:
        total = total * loss_weight            # python float: no dtype promotion
    return total


def _reference(pred, label, reduction="mean", loss_weight=1.0):
    loss = jnp.exp(label) * (label - pred)
    if reduction == "mean":
        loss = jnp.mean(loss)
    elif reduction == "sum":
        loss = jnp.sum(loss)
    return loss_weight * loss


if __name__ == "__main__":
    key = jax.random.PRNGKey(0)
    k1, k2, k3, k4, k5, k6 = jax.random.split(key, 6)

    # cls_score / label are log-probabilities (F.kl_div with log_target=True).
    N, C, H, W = 2, 4, 64, 64   # 32768 elems -> 32 lane-rows -> 2 parallel blocks
    cls_score = jax.nn.log_softmax(
        jax.random.normal(k1, (N, C, H, W), dtype=jnp.float32), axis=1)
    label = jax.nn.log_softmax(
        jax.random.normal(k2, (N, C, H, W), dtype=jnp.float32), axis=1)

    # reduction='mean'
    loss = jax.block_until_ready(
        kl_divergence_loss(cls_score, label, reduction="mean", loss_weight=1.0))
    ref = _reference(cls_score, label, "mean", 1.0)
    assert jnp.allclose(loss, ref, rtol=1e-5, atol=1e-6), (loss, ref)

    # reduction='sum' with loss_weight
    loss_sum = jax.block_until_ready(
        kl_divergence_loss(cls_score, label, reduction="sum", loss_weight=0.5))
    ref_sum = _reference(cls_score, label, "sum", 0.5)
    assert jnp.allclose(loss_sum, ref_sum, rtol=1e-5, atol=1e-4), (loss_sum, ref_sum)

    # reduction='none' (elementwise path, loss_weight folded in-kernel)
    loss_none = jax.block_until_ready(
        kl_divergence_loss(cls_score, label, reduction="none", loss_weight=2.0))
    ref_none = _reference(cls_score, label, "none", 2.0)
    assert loss_none.shape == (N, C, H, W)
    assert loss_none.dtype == cls_score.dtype
    assert jnp.allclose(loss_none, ref_none, rtol=1e-5, atol=1e-6)

    # Lane-aligned but not block-aligned rows: exercises in-kernel row masking.
    a = jax.nn.log_softmax(jax.random.normal(k3, (3, 4, 16, 16), jnp.float32), axis=1)
    b = jax.nn.log_softmax(jax.random.normal(k4, (3, 4, 16, 16), jnp.float32), axis=1)
    loss2 = jax.block_until_ready(kl_divergence_loss(a, b, reduction="mean"))
    ref2 = _reference(a, b, "mean", 1.0)
    assert jnp.allclose(loss2, ref2, rtol=1e-5, atol=1e-6), (loss2, ref2)

    # Lane-unaligned size: exercises aligned-prefix kernel + ragged jnp tail.
    c = jax.nn.log_softmax(jax.random.normal(k5, (3, 5, 33, 17), jnp.float32), axis=1)
    d = jax.nn.log_softmax(jax.random.normal(k6, (3, 5, 33, 17), jnp.float32), axis=1)
    loss3 = jax.block_until_ready(kl_divergence_loss(c, d, reduction="mean"))
    ref3 = _reference(c, d, "mean", 1.0)
    assert jnp.allclose(loss3, ref3, rtol=1e-5, atol=1e-6), (loss3, ref3)
    loss3n = jax.block_until_ready(kl_divergence_loss(c, d, reduction="none"))
    assert loss3n.shape == c.shape
    assert jnp.allclose(loss3n, _reference(c, d, "none", 1.0), rtol=1e-5, atol=1e-6)

    print("KERNEL_OK")
</pallas_src>

<mosaic_0001>
module attributes {stable_mosaic.version = 11 : i64} {
  func.func @_kl_sum_kernel(%arg0: i32, %arg1: memref<16x1024xf32, #tpu.memory_space<vmem>>, %arg2: memref<16x1024xf32, #tpu.memory_space<vmem>>, %arg3: memref<8x128xf32, #tpu.memory_space<vmem>>) attributes {dimension_semantics = [#tpu.dimension_semantics<parallel>], iteration_bounds = array<i64: 2>, scalar_prefetch = 0 : i64, scratch_operands = 0 : i64, tpu.core_type = #tpu.core_type<tc>, window_params = [{transform_indices = @transform_0, window_bounds = array<i64: 16, 1024>}, {transform_indices = @transform_1, window_bounds = array<i64: 16, 1024>}, {transform_indices = @transform_2, window_bounds = array<i64: 8, 128>}]} {
    %cst = arith.constant 0.000000e+00 : f32
    %0 = vector.broadcast %cst : f32 to vector<8x1024xf32>
    %c0 = arith.constant 0 : index
    %c0_0 = arith.constant 0 : index
    %1 = vector.load %arg2[%c0, %c0_0] : memref<16x1024xf32, #tpu.memory_space<vmem>>, vector<16x1024xf32>
    %c0_1 = arith.constant 0 : index
    %c0_2 = arith.constant 0 : index
    %2 = vector.load %arg1[%c0_1, %c0_2] : memref<16x1024xf32, #tpu.memory_space<vmem>>, vector<16x1024xf32>
    %3 = math.exp %1 : vector<16x1024xf32>
    %4 = arith.subf %1, %2 : vector<16x1024xf32>
    %5 = arith.mulf %3, %4 : vector<16x1024xf32>
    %6 = vector.shape_cast %5 : vector<16x1024xf32> to vector<2x8x1024xf32>
    %cst_3 = arith.constant dense<0.000000e+00> : vector<8x1024xf32>
    %7 = vector.multi_reduction <add>, %6, %cst_3 [0] : vector<2x8x1024xf32> to vector<8x1024xf32>
    %8 = arith.addf %0, %7 : vector<8x1024xf32>
    %9 = vector.extract_strided_slice %8 {offsets = [0, 0], sizes = [8, 128], strides = [1, 1]} : vector<8x1024xf32> to vector<8x128xf32>
    %10 = vector.extract_strided_slice %8 {offsets = [0, 128], sizes = [8, 128], strides = [1, 1]} : vector<8x1024xf32> to vector<8x128xf32>
    %11 = arith.addf %9, %10 : vector<8x128xf32>
    %12 = vector.extract_strided_slice %8 {offsets = [0, 256], sizes = [8, 128], strides = [1, 1]} : vector<8x1024xf32> to vector<8x128xf32>
    %13 = arith.addf %11, %12 : vector<8x128xf32>
    %14 = vector.extract_strided_slice %8 {offsets = [0, 384], sizes = [8, 128], strides = [1, 1]} : vector<8x1024xf32> to vector<8x128xf32>
    %15 = arith.addf %13, %14 : vector<8x128xf32>
    %16 = vector.extract_strided_slice %8 {offsets = [0, 512], sizes = [8, 128], strides = [1, 1]} : vector<8x1024xf32> to vector<8x128xf32>
    %17 = arith.addf %15, %16 : vector<8x128xf32>
    %18 = vector.extract_strided_slice %8 {offsets = [0, 640], sizes = [8, 128], strides = [1, 1]} : vector<8x1024xf32> to vector<8x128xf32>
    %19 = arith.addf %17, %18 : vector<8x128xf32>
    %20 = vector.extract_strided_slice %8 {offsets = [0, 768], sizes = [8, 128], strides = [1, 1]} : vector<8x1024xf32> to vector<8x128xf32>
    %21 = arith.addf %19, %20 : vector<8x128xf32>
    %22 = vector.extract_strided_slice %8 {offsets = [0, 896], sizes = [8, 128], strides = [1, 1]} : vector<8x1024xf32> to vector<8x128xf32>
    %23 = arith.addf %21, %22 : vector<8x128xf32>
    %c0_4 = arith.constant 0 : index
    %c0_5 = arith.constant 0 : index
    %24 = vector.load %arg3[%c0_4, %c0_5] : memref<8x128xf32, #tpu.memory_space<vmem>>, vector<8x128xf32>
    tpu.vector_store %arg3[%c0_4, %c0_5], %23 {strides = array<i32>} : memref<8x128xf32, #tpu.memory_space<vmem>>, vector<8x128xf32>,
    return
  }
  func.func @transform_0(%arg0: i32) -> (i32, i32) {
    %c0_i32 = arith.constant 0 : i32
    %c0_i32_0 = arith.constant 0 : i32
    return %arg0, %c0_i32 : i32, i32
  }
  func.func @transform_1(%arg0: i32) -> (i32, i32) {
    %c0_i32 = arith.constant 0 : i32
    %c0_i32_0 = arith.constant 0 : i32
    return %arg0, %c0_i32 : i32, i32
  }
  func.func @transform_2(%arg0: i32) -> (i32, i32) {
    %c0_i32 = arith.constant 0 : i32
    %c0_i32_0 = arith.constant 0 : i32
    return %arg0, %c0_i32 : i32, i32
  }
}

</mosaic_0001>

<llo_original>
// kernel: kl_divergence_loss.1
$region0: #{kl_divergence_loss.1}
  #allocation0 [shape = 'u32[]', space=smem, size = 0x4, offset = 0x4, fixed_abs, tag = 'smem constant byte address 0x4 - core index']
  #allocation1 [shape = 'u32[144,128]{1,0:T(1,128)}', space=vmem, size = 0x12000, scoped, tag = 'internal scratch']
  %s0 = inlined_call_operand.vmem [shape: f32[32,1024], index: 0, kind: input, shape index: {}]
  %s1 = inlined_call_operand.vmem [shape: f32[32,1024], index: 1, kind: input, shape index: {}]
  %s2 = inlined_call_operand.vmem [shape: f32[16,128], index: 2, kind: output, shape index: {}]
  %s3 = sld [smem:[#allocation0]]
  $region41: #{kl_divergence_loss.1} parent=0
    _
  %s5 = ssub.s32 1, %s3
  %s6 = scalar_select 0, %s5, %s3
  loop: start=0, step=1, limit=4
  $region2: #{kl_divergence_loss.1} parent=0 // loop_pre_header
    _
  $region3: #{kl_divergence_loss.1} parent=0 // loop_header
    %s8 = sphi 0, %s12
    %p9 = scmp.ge.s32.totalorder %s8, 4
    %s18 = sphi 0, %s20
    %s21 = sphi 0, %s18
    %s22 = sphi 0, %s21
    %s38 = sphi 0, %s22
    %s44 = sphi 0, %s46
    %s47 = sphi 0, %s44
    %s48 = sphi 0, %s47
    %s64 = sphi 0, %s48
    %s70 = sphi 0, %s72
    %s73 = sphi 0, %s70
    %s74 = sphi 0, %s73
    %s90 = sphi 0, %s74
  $region4: #{kl_divergence_loss.1} parent=0 // loop_header_branch
    %11 = sbr.rel (%p9) target = $region8
  $region5: #{kl_divergence_loss.1} parent=0 // loop_body
    %s13 = ssub.s32 %s8, 1
    %s14 = ssub.s32 %s8, 2
    %s15 = sadd.s32 %s8, 1
    %s16 = ssub.s32 %s8, %s15
    %p17 = scmp.eq.s32.totalorder %s16, 0
    %s19 = sadd.s32 %s18, 1
    %s20 = scalar_select %p17, %s18, %s19
    %p23 = pneg %p17
    %p24 = scmp.eq.s32.totalorder %s8, 1
    %p25 = por %p23, %p24
    %p26 = scmp.ne.s32.totalorder %s18, %s21
    %p27 = scmp.eq.s32.totalorder %s8, 0
    %p28 = por %p26, %p27
    %p29 = scmp.ne.s32.totalorder %s18, %s21
    %p30 = scmp.eq.s32.totalorder %s13, 1
    %p31 = por %p29, %p30
    %p32 = scmp.ne.s32.totalorder %s21, %s22
    %p33 = scmp.eq.s32.totalorder %s13, 0
    %p34 = por %p32, %p33
    %p35 = scmp.ne.s32.totalorder %s21, %s22
    %p36 = scmp.eq.s32.totalorder %s14, 1
    %p37 = por %p35, %p36
    %p39 = scmp.ne.s32.totalorder %s22, %s38
    %p40 = scmp.eq.s32.totalorder %s14, 0
    %p41 = por %p39, %p40
    %s42 = ssub.s32 %s8, %s15
    %p43 = scmp.eq.s32.totalorder %s42, 0
    %s45 = sadd.s32 %s44, 1
    %s46 = scalar_select %p43, %s44, %s45
    %p49 = pneg %p43
    %p50 = scmp.eq.s32.totalorder %s8, 1
    %p51 = por %p49, %p50
    %p52 = scmp.ne.s32.totalorder %s44, %s47
    %p53 = scmp.eq.s32.totalorder %s8, 0
    %p54 = por %p52, %p53
    %p55 = scmp.ne.s32.totalorder %s44, %s47
    %p56 = scmp.eq.s32.totalorder %s13, 1
    %p57 = por %p55, %p56
    %p58 = scmp.ne.s32.totalorder %s47, %s48
    %p59 = scmp.eq.s32.totalorder %s13, 0
    %p60 = por %p58, %p59
    %p61 = scmp.ne.s32.totalorder %s47, %s48
    %p62 = scmp.eq.s32.totalorder %s14, 1
    %p63 = por %p61, %p62
    %p65 = scmp.ne.s32.totalorder %s48, %s64
    %p66 = scmp.eq.s32.totalorder %s14, 0
    %p67 = por %p65, %p66
    %s68 = ssub.s32 %s8, %s15
    %p69 = scmp.eq.s32.totalorder %s68, 0
    %s71 = sadd.s32 %s70, 1
    %s72 = scalar_select %p69, %s70, %s71
    %p75 = pneg %p69
    %p76 = scmp.eq.s32.totalorder %s8, 1
    %p77 = por %p75, %p76
    %p78 = scmp.ne.s32.totalorder %s70, %s73
    %p79 = scmp.eq.s32.totalorder %s8, 0
    %p80 = por %p78, %p79
    %p81 = scmp.ne.s32.totalorder %s70, %s73
    %p82 = scmp.eq.s32.totalorder %s13, 1
    %p83 = por %p81, %p82
    %p84 = scmp.ne.s32.totalorder %s73, %s74
    %p85 = scmp.eq.s32.totalorder %s13, 0
    %p86 = por %p84, %p85
    %p87 = scmp.ne.s32.totalorder %s73, %s74
    %p88 = scmp.eq.s32.totalorder %s14, 1
    %p89 = por %p87, %p88
    %p91 = scmp.ne.s32.totalorder %s74, %s90
    %p92 = scmp.eq.s32.totalorder %s14, 0
    %p93 = por %p91, %p92
    %p94 = scmp.le.s32.totalorder 1, %s8
    %p95 = scmp.lt.s32.totalorder %s8, 3
    %p96 = pnand %p94, %p95
    %p97 = pneg %p96
    // Predicated region
    $region9: #{kl_divergence_loss.1} parent=5 // pred_check
      _
    $region10: #{kl_divergence_loss.1} parent=5 // pred_check_branch
      %99 = sbr.rel (%p96) target = $region12
    $region11: #{kl_divergence_loss.1} parent=5 // pred_region
      %s100 = ssub.s32 %s8, 1
    $region12: #{kl_divergence_loss.1} parent=5 // pred_fallthru
      _
    %p101 = scmp.lt.s32.totalorder %s8, 2
    // Predicated region
    $region13: #{kl_divergence_loss.1} parent=5 // pred_check
      %p102 = pneg %p101
    $region14: #{kl_divergence_loss.1} parent=5 // pred_check_branch
      %104 = sbr.rel (%p102) target = $region16
    $region15: #{kl_divergence_loss.1} parent=5 // pred_region
      // Predicated region
      $region17: #{kl_divergence_loss.1} parent=15 // pred_check
        %p105 = pneg %p28
      $region18: #{kl_divergence_loss.1} parent=15 // pred_check_branch
        %107 = sbr.rel (%p105) target = $region20
      $region19: #{kl_divergence_loss.1} parent=15 // pred_region
        %s108 = smul.u32 2, %s8
        %p109 = scmp.lt.s32.totalorder %s108, 3
        %s110 = scalar_select %p109, %s108, 3
        %s111 = smul.addr %s110, 8
        %s112 = smul.addr %s111, 8
        %s113 = scalar_lea.vmem %s0, %s112
        %s114 = smul.u32 2, %s8
      $region20: #{kl_divergence_loss.1} parent=15 // pred_fallthru
        _
      // Predicated region
      $region21: #{kl_divergence_loss.1} parent=15 // pred_check
        %p115 = pneg %p54
      $region22: #{kl_divergence_loss.1} parent=15 // pred_check_branch
        %117 = sbr.rel (%p115) target = $region24
      $region23: #{kl_divergence_loss.1} parent=15 // pred_region
        %s118 = smul.u32 2, %s8
        %p119 = scmp.lt.s32.totalorder %s118, 3
        %s120 = scalar_select %p119, %s118, 3
        %s121 = smul.addr %s120, 8
        %s122 = smul.addr %s121, 8
        %s123 = scalar_lea.vmem %s1, %s122
        %s124 = smul.u32 2, %s8
      $region24: #{kl_divergence_loss.1} parent=15 // pred_fallthru
        _
    $region16: #{kl_divergence_loss.1} parent=5 // pred_fallthru
      _
    %p125 = scmp.le.s32.totalorder 1, %s8
    %p126 = scmp.lt.s32.totalorder %s8, 3
    %p127 = pnand %p125, %p126
    %p128 = pneg %p127
    // Predicated region
    $region25: #{kl_divergence_loss.1} parent=5 // pred_check
      _
    $region26: #{kl_divergence_loss.1} parent=5 // pred_check_branch
      %130 = sbr.rel (%p127) target = $region28
    $region27: #{kl_divergence_loss.1} parent=5 // pred_region
      %s131 = ssub.s32 %s8, 1
      %s132 = smul.u32 2, %s13
      %p133 = scmp.lt.s32.totalorder %s132, 3
      %s134 = scalar_select %p133, %s132, 3
      %s135 = smul.addr %s134, 8
      %s136 = smul.addr %s135, 8
      %s137 = scalar_lea.vmem %s0, %s136
      %p138 = pneg %p34
      %p139 = pneg %p31
      %s140 = smul.u32 2, %s13
      %p141 = scmp.lt.s32.totalorder %s140, 3
      %s142 = scalar_select %p141, %s140, 3
      %s143 = smul.addr %s142, 8
      %s144 = smul.addr %s143, 8
      %s145 = scalar_lea.vmem %s1, %s144
      %p146 = pneg %p60
      %p147 = pneg %p57
      %p148 = pneg %p86
      %p149 = pneg %p83
      %p150 = scmp.lt.s32.totalorder %s13, 1
      %s151 = scalar_select %p150, %s13, 1
      %s152 = smul.addr %s151, 8
      %s153 = scalar_lea.vmem %s2, %s152
      %s154 = smul.u32 2, %s13
      %p155 = scmp.lt.s32.totalorder %s154, 3
      %s156 = scalar_select %p155, %s154, 3
      %s157 = smul.addr %s156, 8
      %s158 = smul.addr %s157, 8
      %s159 = scalar_lea.vmem %s0, %s158
      %s160 = smul.u32 2, %s13
      %s161 = smul.u32 2, %s13
      %p162 = scmp.lt.s32.totalorder %s161, 3
      %s163 = scalar_select %p162, %s161, 3
      %s164 = smul.addr %s163, 8
      %s165 = smul.addr %s164, 8
      %s166 = scalar_lea.vmem %s1, %s165
      %s167 = smul.u32 2, %s13
      %p168 = scmp.lt.s32.totalorder %s13, 1
      %s169 = scalar_select %p168, %s13, 1
      %s170 = smul.addr %s169, 8
      %s171 = scalar_lea.vmem %s2, %s170
      %v172 = vld [vmem:[%s166] sm:$0xff]
      %v173 = vld [vmem:[%s166 + $0x8] sm:$0xff]
      %v174 = vld [vmem:[%s166 + $0x10] sm:$0xff]
      %v175 = vld [vmem:[%s166 + $0x18] sm:$0xff]
      %v176 = vld [vmem:[%s166 + $0x20] sm:$0xff]
      %v177 = vld [vmem:[%s166 + $0x28] sm:$0xff]
      %v178 = vld [vmem:[%s166 + $0x30] sm:$0xff]
      %v179 = vld [vmem:[%s166 + $0x38] sm:$0xff]
      %v180 = vld [vmem:[%s166 + $0x40] sm:$0xff]
      %v181 = vld [vmem:[%s166 + $0x48] sm:$0xff]
      %v182 = vld [vmem:[%s166 + $0x50] sm:$0xff]
      %v183 = vld [vmem:[%s166 + $0x58] sm:$0xff]
      %v184 = vld [vmem:[%s166 + $0x60] sm:$0xff]
      %v185 = vld [vmem:[%s166 + $0x68] sm:$0xff]
      %v186 = vld [vmem:[%s166 + $0x70] sm:$0xff]
      %v187 = vld [vmem:[%s166 + $0x78] sm:$0xff]
      %v188 = vld [vmem:[%s159] sm:$0xff]
      %v189 = vld [vmem:[%s159 + $0x8] sm:$0xff]
      %v190 = vld [vmem:[%s159 + $0x10] sm:$0xff]
      %v191 = vld [vmem:[%s159 + $0x18] sm:$0xff]
      %v192 = vld [vmem:[%s159 + $0x20] sm:$0xff]
      %v193 = vld [vmem:[%s159 + $0x28] sm:$0xff]
      %v194 = vld [vmem:[%s159 + $0x30] sm:$0xff]
      %v195 = vld [vmem:[%s159 + $0x38] sm:$0xff]
      %v196 = vld [vmem:[%s159 + $0x40] sm:$0xff]
      %v197 = vld [vmem:[%s159 + $0x48] sm:$0xff]
      %v198 = vld [vmem:[%s159 + $0x50] sm:$0xff]
      %v199 = vld [vmem:[%s159 + $0x58] sm:$0xff]
      %v200 = vld [vmem:[%s159 + $0x60] sm:$0xff]
      %v201 = vld [vmem:[%s159 + $0x68] sm:$0xff]
      %v202 = vld [vmem:[%s159 + $0x70] sm:$0xff]
      %v203 = vld [vmem:[%s159 + $0x78] sm:$0xff]
      %v204 = vmul.f32 %v172, 1.442695
      %v205 = vpow.pop %v204
      %v206 = vmul.f32 %v173, 1.442695
      %v207 = vpow.pop %v206
      %v208 = vmul.f32 %v174, 1.442695
      %v209 = vpow.pop %v208
      %v210 = vmul.f32 %v175, 1.442695
      %v211 = vpow.pop %v210
      %v212 = vmul.f32 %v176, 1.442695
      %v213 = vpow.pop %v212
      %v214 = vmul.f32 %v177, 1.442695
      %v215 = vpow.pop %v214
      %v216 = vmul.f32 %v178, 1.442695
      %v217 = vpow.pop %v216
      %v218 = vmul.f32 %v179, 1.442695
      %v219 = vpow.pop %v218
      %v220 = vmul.f32 %v180, 1.442695
      %v221 = vpow.pop %v220
      %v222 = vmul.f32 %v181, 1.442695
      %v223 = vpow.pop %v222
      %v224 = vmul.f32 %v182, 1.442695
      %v225 = vpow.pop %v224
      %v226 = vmul.f32 %v183, 1.442695
      %v227 = vpow.pop %v226
      %v228 = vmul.f32 %v184, 1.442695
      %v229 = vpow.pop %v228
      %v230 = vmul.f32 %v185, 1.442695
      %v231 = vpow.pop %v230
      %v232 = vmul.f32 %v186, 1.442695
      %v233 = vpow.pop %v232
      %v234 = vmul.f32 %v187, 1.442695
      %v235 = vpow.pop %v234
      %v236 = vsub.f32 %v172, %v188
      %v237 = vsub.f32 %v173, %v189
      %v238 = vsub.f32 %v174, %v190
      %v239 = vsub.f32 %v175, %v191
      %v240 = vsub.f32 %v176, %v192
      %v241 = vsub.f32 %v177, %v193
      %v242 = vsub.f32 %v178, %v194
      %v243 = vsub.f32 %v179, %v195
      %v244 = vsub.f32 %v180, %v196
      %v245 = vsub.f32 %v181, %v197
      %v246 = vsub.f32 %v182, %v198
      %v247 = vsub.f32 %v183, %v199
      %v248 = vsub.f32 %v184, %v200
      %v249 = vsub.f32 %v185, %v201
      %v250 = vsub.f32 %v186, %v202
      %v251 = vsub.f32 %v187, %v203
      %v252 = vmul.f32 %v205, %v236
      %v253 = vmul.f32 %v207, %v237
      %v254 = vmul.f32 %v209, %v238
      %v255 = vmul.f32 %v211, %v239
      %v256 = vmul.f32 %v213, %v240
      %v257 = vmul.f32 %v215, %v241
      %v258 = vmul.f32 %v217, %v242
      %v259 = vmul.f32 %v219, %v243
      %v260 = vmul.f32 %v221, %v244
      %v261 = vmul.f32 %v223, %v245
      %v262 = vmul.f32 %v225, %v246
      %v263 = vmul.f32 %v227, %v247
      %v264 = vmul.f32 %v229, %v248
      %v265 = vmul.f32 %v231, %v249
      %v266 = vmul.f32 %v233, %v250
      %v267 = vmul.f32 %v235, %v251
      %v268 = vadd.f32 %v252, %v260
      %v269 = vadd.f32 %v253, %v261
      %v270 = vadd.f32 %v254, %v262
      %v271 = vadd.f32 %v255, %v263
      %v272 = vadd.f32 %v256, %v264
      %v273 = vadd.f32 %v257, %v265
      %v274 = vadd.f32 %v258, %v266
      %v275 = vadd.f32 %v259, %v267
      %v276 = vadd.f32 %v268, 0.0
      %v277 = vadd.f32 %v269, 0.0
      %v278 = vadd.f32 %v270, 0.0
      %v279 = vadd.f32 %v271, 0.0
      %v280 = vadd.f32 %v272, 0.0
      %v281 = vadd.f32 %v273, 0.0
      %v282 = vadd.f32 %v274, 0.0
      %v283 = vadd.f32 %v275, 0.0
      %v284 = vadd.f32 %v276, %v277
      %v285 = vadd.f32 %v284, %v278
      %v286 = vadd.f32 %v285, %v279
      %v287 = vadd.f32 %v286, %v280
      %v288 = vadd.f32 %v287, %v281
      %v289 = vadd.f32 %v288, %v282
      %v290 = vadd.f32 %v289, %v283
      %291 = vst [vmem:[%s171] sm:$0xff] %v290
      %p292 = scmp.lt.s32.totalorder %s13, 1
      %s293 = scalar_select %p292, %s13, 1
      %s294 = smul.addr %s293, 8
      %s295 = scalar_lea.vmem %s2, %s294
      // Predicated region
      $region29: #{kl_divergence_loss.1} parent=27 // pred_check
        %p296 = pneg %p83
      $region30: #{kl_divergence_loss.1} parent=27 // pred_check_branch
        %298 = sbr.rel (%p296) target = $region32
      $region31: #{kl_divergence_loss.1} parent=27 // pred_region
        _
      $region32: #{kl_divergence_loss.1} parent=27 // pred_fallthru
        _
    $region28: #{kl_divergence_loss.1} parent=5 // pred_fallthru
      _
    %p299 = scmp.le.s32.totalorder 2, %s8
    // Predicated region
    $region33: #{kl_divergence_loss.1} parent=5 // pred_check
      %p300 = pneg %p299
    $region34: #{kl_divergence_loss.1} parent=5 // pred_check_branch
      %302 = sbr.rel (%p300) target = $region36
    $region35: #{kl_divergence_loss.1} parent=5 // pred_region
      %s303 = ssub.s32 %s8, 2
      // Predicated region
      $region37: #{kl_divergence_loss.1} parent=35 // pred_check
        %p304 = pneg %p89
      $region38: #{kl_divergence_loss.1} parent=35 // pred_check_branch
        %306 = sbr.rel (%p304) target = $region40
      $region39: #{kl_divergence_loss.1} parent=35 // pred_region
        %p307 = scmp.lt.s32.totalorder %s14, 1
        %s308 = scalar_select %p307, %s14, 1
        %s309 = smul.addr %s308, 8
        %s310 = scalar_lea.vmem %s2, %s309
      $region40: #{kl_divergence_loss.1} parent=35 // pred_fallthru
        _
    $region36: #{kl_divergence_loss.1} parent=5 // pred_fallthru
      _
  $region6: #{kl_divergence_loss.1} parent=0 // loop_footer
    %s12 = sadd.s32 1, %s8
  $region7: #{kl_divergence_loss.1} parent=0 // loop_footer_branch
    %7 = sbr.rel target = $region3
  $region8: #{kl_divergence_loss.1} parent=0 // loop_exit
    _

</llo_original>
